<compile_context>
chip_gen: v7x
topology: tpu7x:2x2x1
jax: 0.10.0
libtpu: 0.0.40
codegen_flags: <defaults>
</compile_context>

<pallas_src>
import jax
import jax.numpy as jnp
from jax.experimental import pallas as pl
from jax.experimental.pallas import tpu as pltpu


def _decoder_kernel(gene_ref, wq_ref, bq_ref, wcell_ref, out_ref):
    # gene_ref  : (1, TS, D)  one batch element's gene-embedding tile (native dtype)
    # wq_ref    : (D, D)      gene2query weight, transposed (in x out), compute dtype
    # bq_ref    : (1, D)      gene2query bias, float32
    # wcell_ref : (1, 1, D)   folded Ww^T @ cell_emb[b] for this batch element, float32
    # out_ref   : (1, 1, TS)  predicted values for this (batch, seq-tile), float32
    g = gene_ref[0].astype(wq_ref.dtype)                              # in-kernel cast (no HBM pre-pass)
    q = jnp.dot(g, wq_ref[...], preferred_element_type=jnp.float32)   # MXU, f32 accumulate
    q = jax.nn.sigmoid(q + bq_ref[...])                               # bias + sigmoid in f32 (VPU/EUP)

    wc = wcell_ref[0]                                                 # (1, D) f32
    # pred[s] = sum_d q[s, d] * wc[d] — VPU multiply + XLU lane reduce, f32 accumulation.
    pred = jnp.sum(q * wc, axis=-1)                                   # (TS,)
    out_ref[0, 0, :] = pred.astype(out_ref.dtype)


def _pick_seq_tile(S, D, in_itemsize):
    """Largest lane-aligned (multiple-of-128) sequence tile within a VMEM budget.

    Budget keeps one gene tile <= ~4 MiB per pipeline buffer, so double-buffered
    inputs + f32 intermediates stay far under v7x's 64 MiB per-core VMEM.
    """
    if S < 128:
        return S  # tiny sequences: single full-extent block (block == full dim is legal)
    budget = 4 * 1024 * 1024
    for ts in (2048, 1024, 512, 256, 128):
        if ts <= S and ts * D * in_itemsize <= budget:
            return ts
    return 128


def inner_product_decoder(cell_emb, gene_embs, wq_t, bq, ww_t,
                          *, compute_dtype=jnp.bfloat16):
    """Fused Pallas forward.

    cell_emb : (B, d_in)
    gene_embs: (B, S, d_model)
    wq_t     : (d_model, d_model)  == gene2query.weight.T
    bq       : (d_model,)          == gene2query.bias
    ww_t     : (d_model, d_in)     == W.weight.T
    returns  : (B, S) float32
    """
    B, S, D = gene_embs.shape
    d_in = ww_t.shape[1]
    assert cell_emb.shape == (B, d_in)
    assert wq_t.shape == (D, D) and bq.shape == (D,) and ww_t.shape[0] == D

    # Algebraic fold (exact): pred[b,s] = sigmoid(g Wq^T + bq) . (Ww^T cell[b]).
    # Tiny (B,d_in)x(d_in,D) matmul done once in f32; kept f32 into the kernel.
    w_cell = jnp.einsum("de,be->bd", ww_t.astype(jnp.float32),
                        cell_emb.astype(jnp.float32)).reshape(B, 1, D)   # (B,1,D) f32

    TS = _pick_seq_tile(S, D, gene_embs.dtype.itemsize)
    grid = (B, pl.cdiv(S, TS))          # partial last seq tile handled by masked stores

    wq_c = wq_t.astype(compute_dtype)   # tiny (D,D) cast; resident in VMEM
    bq2 = bq.astype(jnp.float32).reshape(1, D)

    out = pl.pallas_call(
        _decoder_kernel,
        out_shape=jax.ShapeDtypeStruct((B, 1, S), jnp.float32),
        grid_spec=pltpu.PrefetchScalarGridSpec(
            num_scalar_prefetch=0,
            grid=grid,
            in_specs=[
                pl.BlockSpec((1, TS, D), lambda b, s: (b, s, 0)),   # gene tile (native dtype)
                pl.BlockSpec((D, D), lambda b, s: (0, 0)),          # Wq^T (grid-invariant resident)
                pl.BlockSpec((1, D), lambda b, s: (0, 0)),          # bq   (grid-invariant resident)
                pl.BlockSpec((1, 1, D), lambda b, s: (b, 0, 0)),    # folded Ww^T @ cell_emb[b]
            ],
            out_specs=pl.BlockSpec((1, 1, TS), lambda b, s: (b, 0, s)),
        ),
        compiler_params=pltpu.CompilerParams(
            dimension_semantics=("parallel", "parallel"),
            vmem_limit_bytes=48 * 1024 * 1024,   # <= ~48 MiB: safe on v7x, ample on v5e/v6e
        ),
    )(gene_embs, wq_c, bq2, w_cell)
    return out.reshape(B, S)


def _reference(cell_emb, gene_embs, wq_t, bq, ww_t):
    q = jax.nn.sigmoid(jnp.einsum("bsd,de->bse", gene_embs, wq_t) + bq)
    v = jnp.einsum("bsd,de->bse", q, ww_t)               # (B, S, d_in)
    return jnp.einsum("bse,be->bs", v, cell_emb)         # bmm + squeeze


if __name__ == "__main__":
    B, S, d_model, d_in = 2, 8, 32, 32

    key = jax.random.PRNGKey(0)
    k1, k2, k3, k4, k5 = jax.random.split(key, 5)

    # Deterministic parameter init (synthetic; mimics Linear layer shapes).
    wq_t = jax.random.normal(k1, (d_model, d_model), jnp.float32) * 0.1  # gene2query.weight.T
    bq = jax.random.normal(k2, (d_model,), jnp.float32) * 0.1            # gene2query.bias
    ww_t = jax.random.normal(k3, (d_model, d_in), jnp.float32) * 0.1     # W.weight.T (no bias)

    gene_embs = jax.random.normal(k4, (B, S, d_model), jnp.float32)
    cell_emb = jax.random.normal(k5, (B, d_in), jnp.float32)

    ref = _reference(cell_emb, gene_embs, wq_t, bq, ww_t)

    # f32 compute path: the algebraic fold is exact, so it must match tightly.
    pred_f32 = inner_product_decoder(cell_emb, gene_embs, wq_t, bq, ww_t,
                                     compute_dtype=jnp.float32)
    pred_f32 = jax.block_until_ready(pred_f32)
    assert pred_f32.shape == (B, S)
    assert jnp.allclose(pred_f32, ref, atol=1e-4, rtol=1e-4), "f32 mismatch vs reference"

    # bf16 MXU path (default): f32 accumulation everywhere, looser tolerance.
    pred = inner_product_decoder(cell_emb, gene_embs, wq_t, bq, ww_t)
    pred = jax.block_until_ready(pred)
    assert pred.shape == (B, S)
    assert jnp.allclose(pred, ref, atol=5e-2, rtol=5e-2), "bf16 mismatch vs reference"

    print("KERNEL_OK")
</pallas_src>

<mosaic_0001>
module attributes {stable_mosaic.version = 11 : i64} {
  func.func @_decoder_kernel(%arg0: i32, %arg1: i32, %arg2: memref<1x8x32xf32, #tpu.memory_space<vmem>>, %arg3: memref<32x32xf32, #tpu.memory_space<vmem>>, %arg4: memref<1x32xf32, #tpu.memory_space<vmem>>, %arg5: memref<1x1x32xf32, #tpu.memory_space<vmem>>, %arg6: memref<1x1x8xf32, #tpu.memory_space<vmem>>) attributes {dimension_semantics = [#tpu.dimension_semantics<parallel>, #tpu.dimension_semantics<parallel>], iteration_bounds = array<i64: 2, 1>, scalar_prefetch = 0 : i64, scratch_operands = 0 : i64, tpu.core_type = #tpu.core_type<tc>, window_params = [{transform_indices = @transform_0, window_bounds = array<i64: 1, 8, 32>}, {pipeline_mode = #tpu.pipeline_mode<synchronous>, transform_indices = @transform_1, window_bounds = array<i64: 32, 32>}, {pipeline_mode = #tpu.pipeline_mode<synchronous>, transform_indices = @transform_2, window_bounds = array<i64: 1, 32>}, {transform_indices = @transform_3, window_bounds = array<i64: 1, 1, 32>}, {transform_indices = @transform_4, window_bounds = array<i64: 1, 1, 8>}]} {
    %c0 = arith.constant 0 : index
    %c0_0 = arith.constant 0 : index
    %c0_1 = arith.constant 0 : index
    %0 = vector.load %arg2[%c0, %c0_0, %c0_1] : memref<1x8x32xf32, #tpu.memory_space<vmem>>, vector<1x8x32xf32>
    %1 = vector.shape_cast %0 : vector<1x8x32xf32> to vector<8x32xf32>
    %c0_2 = arith.constant 0 : index
    %c0_3 = arith.constant 0 : index
    %2 = vector.load %arg3[%c0_2, %c0_3] : memref<32x32xf32, #tpu.memory_space<vmem>>, vector<32x32xf32>
    %cst = arith.constant dense<0.000000e+00> : vector<8x32xf32>
    %3 = tpu.matmul %1, %2, %cst {dimension_numbers = #tpu.dot_dimension_numbers<[1], [0], [0], [1], [0, 0, 1, 1], [], []>} : vector<8x32xf32>, vector<32x32xf32>, vector<8x32xf32> -> vector<8x32xf32>
    %c0_4 = arith.constant 0 : index
    %c0_5 = arith.constant 0 : index
    %4 = vector.load %arg4[%c0_4, %c0_5] : memref<1x32xf32, #tpu.memory_space<vmem>>, vector<1x32xf32>
    %5 = vector.broadcast %4 : vector<1x32xf32> to vector<8x32xf32>
    %6 = arith.addf %3, %5 : vector<8x32xf32>
    %7 = arith.negf %6 : vector<8x32xf32>
    %8 = math.exp %7 : vector<8x32xf32>
    %cst_6 = arith.constant 1.000000e+00 : f32
    %9 = vector.broadcast %cst_6 : f32 to vector<8x32xf32>
    %10 = arith.addf %9, %8 : vector<8x32xf32>
    %11 = arith.divf %9, %10 : vector<8x32xf32>
    %c0_7 = arith.constant 0 : index
    %c0_8 = arith.constant 0 : index
    %c0_9 = arith.constant 0 : index
    %12 = vector.load %arg5[%c0_7, %c0_8, %c0_9] : memref<1x1x32xf32, #tpu.memory_space<vmem>>, vector<1x1x32xf32>
    %13 = vector.shape_cast %12 : vector<1x1x32xf32> to vector<1x32xf32>
    %14 = vector.broadcast %13 : vector<1x32xf32> to vector<8x32xf32>
    %15 = arith.mulf %11, %14 : vector<8x32xf32>
    %cst_10 = arith.constant dense<0.000000e+00> : vector<8xf32>
    %16 = vector.multi_reduction <add>, %15, %cst_10 [1] : vector<8x32xf32> to vector<8xf32>
    %c0_11 = arith.constant 0 : index
    %c0_12 = arith.constant 0 : index
    %c0_13 = arith.constant 0 : index
    %17 = vector.load %arg6[%c0_11, %c0_12, %c0_13] : memref<1x1x8xf32, #tpu.memory_space<vmem>>, vector<1x1x8xf32>
    %18 = vector.shape_cast %17 : vector<1x1x8xf32> to vector<8xf32>
    %19 = vector.shape_cast %16 : vector<8xf32> to vector<1x1x8xf32>
    tpu.vector_store %arg6[%c0_11, %c0_12, %c0_13], %19 {strides = array<i32>} : memref<1x1x8xf32, #tpu.memory_space<vmem>>, vector<1x1x8xf32>,
    return
  }
  func.func @transform_0(%arg0: i32, %arg1: i32) -> (i32, i32, i32) {
    %c0_i32 = arith.constant 0 : i32
    %c0_i32_0 = arith.constant 0 : i32
    return %arg0, %arg1, %c0_i32 : i32, i32, i32
  }
  func.func @transform_1(%arg0: i32, %arg1: i32) -> (i32, i32) {
    %c0_i32 = arith.constant 0 : i32
    %c0_i32_0 = arith.constant 0 : i32
    %c0_i32_1 = arith.constant 0 : i32
    return %c0_i32, %c0_i32_0 : i32, i32
  }
  func.func @transform_2(%arg0: i32, %arg1: i32) -> (i32, i32) {
    %c0_i32 = arith.constant 0 : i32
    %c0_i32_0 = arith.constant 0 : i32
    %c0_i32_1 = arith.constant 0 : i32
    return %c0_i32, %c0_i32_0 : i32, i32
  }
  func.func @transform_3(%arg0: i32, %arg1: i32) -> (i32, i32, i32) {
    %c0_i32 = arith.constant 0 : i32
    %c0_i32_0 = arith.constant 0 : i32
    %c0_i32_1 = arith.constant 0 : i32
    return %arg0, %c0_i32, %c0_i32_0 : i32, i32, i32
  }
  func.func @transform_4(%arg0: i32, %arg1: i32) -> (i32, i32, i32) {
    %c0_i32 = arith.constant 0 : i32
    %c0_i32_0 = arith.constant 0 : i32
    return %arg0, %c0_i32, %arg1 : i32, i32, i32
  }
}

</mosaic_0001>

<llo_original>
// kernel: tpu_custom_call.1
$region0: #{tpu_custom_call.1}
  #allocation0 [shape = 'u32[]', space=smem, size = 0x4, offset = 0x4, fixed_abs, tag = 'smem constant byte address 0x4 - core index']
  #allocation1 [shape = 'u32[144,128]{1,0:T(1,128)}', space=vmem, size = 0x12000, scoped, tag = 'internal scratch']
  %s0 = inlined_call_operand.hbm [shape: f32[2,8,32], index: 0, kind: input, shape index: {}]
  %s1 = inlined_call_operand.hbm [shape: f32[32,32], index: 1, kind: input, shape index: {}]
  %s2 = inlined_call_operand.vmem [shape: f32[1,32], index: 2, kind: input, shape index: {}]
  %s3 = inlined_call_operand.vmem [shape: f32[2,1,32], index: 3, kind: input, shape index: {}]
  %s4 = inlined_call_operand.hbm [shape: f32[2,1,8], index: 4, kind: output, shape index: {}]
  %s5 = sld [smem:[#allocation0]]
  $region57: #{tpu_custom_call.1} parent=0
    _
  %s7 = ssub.s32 1, %s5
  %s8 = scalar_select 0, %s7, %s5
  $region1: #{tpu_custom_call.1} parent=0
    #allocation2 [shape = 'u8[8192]{0}', space=vmem, size = 0x2000, scoped, tag = 'input window, operand 0']
    #allocation3 [shape = 's32[2]{0}', space=sflag, size = 0x8, scoped, tag = 'scoped memory for tpu_custom_call.1']
    #allocation4 [shape = 's32[2]{0}', space=sflag, size = 0x8, scoped, tag = 'scoped memory for tpu_custom_call.1']
    #allocation5 [shape = 'u8[16384]{0}', space=vmem, size = 0x4000, scoped, tag = 'input window, operand 1, single buffered']
    #allocation6 [shape = 's32[1]{0}', space=sflag, size = 0x4, scoped, tag = 'scoped memory for tpu_custom_call.1']
    #allocation7 [shape = 'u8[1024]{0}', space=vmem, size = 0x400, scoped, tag = 'output window, operand 0']
    %9 = vsyncpa [#allocation3], 0
    %s10 = scalar_lea.sflag [#allocation3], 1
    %11 = vsyncpa %s10, 0
    %12 = vsyncpa [#allocation6], 0
    %13 = vsyncpa [#allocation4], 0
    %s14 = scalar_lea.sflag [#allocation4], 1
    %15 = vsyncpa %s14, 0
    loop: start=0, step=1, limit=4
    $region2: #{tpu_custom_call.1} parent=1 // loop_pre_header
      _
    $region3: #{tpu_custom_call.1} parent=1 // loop_header
      %s17 = sphi 0, %s21
      %p18 = scmp.ge.s32.totalorder %s17, 4
      %s24 = sphi 0, %s36
      %s25 = sphi 0, %s32
      %s26 = sphi 0, %s24
      %s27 = sphi 0, %s25
      %s28 = sphi 0, %s26
      %s29 = sphi 0, %s27
      %s41 = sphi 0, %s43
      %s44 = sphi 0, %s41
      %s45 = sphi 0, %s44
      %s61 = sphi 0, %s45
      %s65 = sphi 0, %s65
      %s67 = sphi 0, %s65
      %s68 = sphi 0, %s67
      %s82 = sphi 0, %s68
      %s86 = sphi 0, %s86
      %s88 = sphi 0, %s86
      %s89 = sphi 0, %s88
      %s103 = sphi 0, %s89
      %s109 = sphi 0, %s111
      %s112 = sphi 0, %s109
      %s113 = sphi 0, %s112
      %s129 = sphi 0, %s113
      %s137 = sphi 0, %s139
      %s140 = sphi 0, %s137
      %s141 = sphi 0, %s140
      %s157 = sphi 0, %s141
    $region4: #{tpu_custom_call.1} parent=1 // loop_header_branch
      %20 = sbr.rel (%p18) target = $region8
    $region5: #{tpu_custom_call.1} parent=1 // loop_body
      %s22 = ssub.s32 %s17, 1
      %s23 = ssub.s32 %s17, 2
      %s30 = sadd.s32 1, %s25
      %p31 = scmp.ge.s32.totalorder %s30, 1
      %s32 = scalar_select %p31, 0, %s30
      %s33 = sadd.s32 1, %s24
      %s34 = scalar_select %p31, %s33, %s24
      %p35 = scmp.ge.s32.totalorder %s34, 2
      %s36 = scalar_select %p35, 0, %s34
      %s37 = ssub.s32 %s24, %s36
      %s38 = ssub.s32 %s25, %s32
      %s39 = sor.u32 %s37, %s38
      %p40 = scmp.eq.s32.totalorder %s39, 0
      %s42 = sadd.s32 %s41, 1
      %s43 = scalar_select %p40, %s41, %s42
      %p46 = pneg %p40
      %p47 = scmp.eq.s32.totalorder %s17, 1
      %p48 = por %p46, %p47
      %p49 = scmp.ne.s32.totalorder %s41, %s44
      %p50 = scmp.eq.s32.totalorder %s17, 0
      %p51 = por %p49, %p50
      %p52 = scmp.ne.s32.totalorder %s41, %s44
      %p53 = scmp.eq.s32.totalorder %s22, 1
      %p54 = por %p52, %p53
      %p55 = scmp.ne.s32.totalorder %s44, %s45
      %p56 = scmp.eq.s32.totalorder %s22, 0
      %p57 = por %p55, %p56
      %p58 = scmp.ne.s32.totalorder %s44, %s45
      %p59 = scmp.eq.s32.totalorder %s23, 1
      %p60 = por %p58, %p59
      %p62 = scmp.ne.s32.totalorder %s45, %s61
      %p63 = scmp.eq.s32.totalorder %s23, 0
      %p64 = por %p62, %p63
      %s66 = sadd.s32 %s65, 1
      %p69 = scmp.eq.s32.totalorder %s17, 1
      %p70 = scmp.ne.s32.totalorder %s65, %s67
      %p71 = scmp.eq.s32.totalorder %s17, 0
      %p72 = por %p70, %p71
      %p73 = scmp.ne.s32.totalorder %s65, %s67
      %p74 = scmp.eq.s32.totalorder %s22, 1
      %p75 = por %p73, %p74
      %p76 = scmp.ne.s32.totalorder %s67, %s68
      %p77 = scmp.eq.s32.totalorder %s22, 0
      %p78 = por %p76, %p77
      %p79 = scmp.ne.s32.totalorder %s67, %s68
      %p80 = scmp.eq.s32.totalorder %s23, 1
      %p81 = por %p79, %p80
      %p83 = scmp.ne.s32.totalorder %s68, %s82
      %p84 = scmp.eq.s32.totalorder %s23, 0
      %p85 = por %p83, %p84
      %s87 = sadd.s32 %s86, 1
      %p90 = scmp.eq.s32.totalorder %s17, 1
      %p91 = scmp.ne.s32.totalorder %s86, %s88
      %p92 = scmp.eq.s32.totalorder %s17, 0
      %p93 = por %p91, %p92
      %p94 = scmp.ne.s32.totalorder %s86, %s88
      %p95 = scmp.eq.s32.totalorder %s22, 1
      %p96 = por %p94, %p95
      %p97 = scmp.ne.s32.totalorder %s88, %s89
      %p98 = scmp.eq.s32.totalorder %s22, 0
      %p99 = por %p97, %p98
      %p100 = scmp.ne.s32.totalorder %s88, %s89
      %p101 = scmp.eq.s32.totalorder %s23, 1
      %p102 = por %p100, %p101
      %p104 = scmp.ne.s32.totalorder %s89, %s103
      %p105 = scmp.eq.s32.totalorder %s23, 0
      %p106 = por %p104, %p105
      %s107 = ssub.s32 %s24, %s36
      %p108 = scmp.eq.s32.totalorder %s107, 0
      %s110 = sadd.s32 %s109, 1
      %s111 = scalar_select %p108, %s109, %s110
      %p114 = pneg %p108
      %p115 = scmp.eq.s32.totalorder %s17, 1
      %p116 = por %p114, %p115
      %p117 = scmp.ne.s32.totalorder %s109, %s112
      %p118 = scmp.eq.s32.totalorder %s17, 0
      %p119 = por %p117, %p118
      %p120 = scmp.ne.s32.totalorder %s109, %s112
      %p121 = scmp.eq.s32.totalorder %s22, 1
      %p122 = por %p120, %p121
      %p123 = scmp.ne.s32.totalorder %s112, %s113
      %p124 = scmp.eq.s32.totalorder %s22, 0
      %p125 = por %p123, %p124
      %p126 = scmp.ne.s32.totalorder %s112, %s113
      %p127 = scmp.eq.s32.totalorder %s23, 1
      %p128 = por %p126, %p127
      %p130 = scmp.ne.s32.totalorder %s113, %s129
      %p131 = scmp.eq.s32.totalorder %s23, 0
      %p132 = por %p130, %p131
      %s133 = ssub.s32 %s24, %s36
      %s134 = ssub.s32 %s25, %s32
      %s135 = sor.u32 %s133, %s134
      %p136 = scmp.eq.s32.totalorder %s135, 0
      %s138 = sadd.s32 %s137, 1
      %s139 = scalar_select %p136, %s137, %s138
      %p142 = pneg %p136
      %p143 = scmp.eq.s32.totalorder %s17, 1
      %p144 = por %p142, %p143
      %p145 = scmp.ne.s32.totalorder %s137, %s140
      %p146 = scmp.eq.s32.totalorder %s17, 0
      %p147 = por %p145, %p146
      %p148 = scmp.ne.s32.totalorder %s137, %s140
      %p149 = scmp.eq.s32.totalorder %s22, 1
      %p150 = por %p148, %p149
      %p151 = scmp.ne.s32.totalorder %s140, %s141
      %p152 = scmp.eq.s32.totalorder %s22, 0
      %p153 = por %p151, %p152
      %p154 = scmp.ne.s32.totalorder %s140, %s141
      %p155 = scmp.eq.s32.totalorder %s23, 1
      %p156 = por %p154, %p155
      %p158 = scmp.ne.s32.totalorder %s141, %s157
      %p159 = scmp.eq.s32.totalorder %s23, 0
      %p160 = por %p158, %p159
      %p161 = scmp.le.s32.totalorder 1, %s17
      %p162 = scmp.lt.s32.totalorder %s17, 3
      %p163 = pnand %p161, %p162
      %p164 = pneg %p163
      // Predicated region
      $region9: #{tpu_custom_call.1} parent=5 // pred_check
        _
      $region10: #{tpu_custom_call.1} parent=5 // pred_check_branch
        %166 = sbr.rel (%p163) target = $region12
      $region11: #{tpu_custom_call.1} parent=5 // pred_region
        %s167 = ssub.s32 %s17, 1
        // Predicated region
        $region13: #{tpu_custom_call.1} parent=11 // pred_check
          %p168 = pneg %p78
        $region14: #{tpu_custom_call.1} parent=11 // pred_check_branch
          %170 = sbr.rel (%p168) target = $region16
        $region15: #{tpu_custom_call.1} parent=11 // pred_region
          %s172 = ssub.s32 512, 512
          %173 = vsyncadd [#allocation6], %s172
          %s174 = sshll.u32 [#allocation5], 4
          %s175 = int_to_ptr.vmem [resolvable:$true] %s174
          %180 = dma.hbm_to_vmem [thread:$0]  %s1, 512, %s175, [#allocation6], 128, 128, 8
        $region16: #{tpu_custom_call.1} parent=11 // pred_fallthru
          _
        // Predicated region
        $region17: #{tpu_custom_call.1} parent=11 // pred_check
          %p181 = pneg %p99
        $region18: #{tpu_custom_call.1} parent=11 // pred_check_branch
          %183 = sbr.rel (%p181) target = $region20
        $region19: #{tpu_custom_call.1} parent=11 // pred_region
          _
        $region20: #{tpu_custom_call.1} parent=11 // pred_fallthru
          _
      $region12: #{tpu_custom_call.1} parent=5 // pred_fallthru
        _
      %p184 = scmp.lt.s32.totalorder %s17, 2
      // Predicated region
      $region21: #{tpu_custom_call.1} parent=5 // pred_check
        %p185 = pneg %p184
      $region22: #{tpu_custom_call.1} parent=5 // pred_check_branch
        %187 = sbr.rel (%p185) target = $region24
      $region23: #{tpu_custom_call.1} parent=5 // pred_region
        // Predicated region
        $region25: #{tpu_custom_call.1} parent=23 // pred_check
          %p188 = pneg %p51
        $region26: #{tpu_custom_call.1} parent=23 // pred_check_branch
          %190 = sbr.rel (%p188) target = $region28
        $region27: #{tpu_custom_call.1} parent=23 // pred_region
          %s191 = sand.u32 %s41, 1
          %s192 = scalar_lea.sflag [#allocation3], %s191
          %s193 = sand.u32 %s41, 1
          %s194 = smul.addr %s193, 8
          %s195 = scalar_lea.vmem [#allocation2], %s194
          %s197 = ssub.s32 128, 128
          %198 = vsyncadd %s192, %s197
          %s199 = sadd.s32 %s25, %s24
          %s200 = smul.addr %s199, 128
          %s201 = scalar_lea.hbm %s0, %s200
          %s203 = sshll.u32 %s195, 4
          %s204 = int_to_ptr.vmem [resolvable:$true] %s203
          %206 = dma.hbm_to_vmem [thread:$0]  %s201, 128, %s204, %s192
        $region28: #{tpu_custom_call.1} parent=23 // pred_fallthru
          _
        // Predicated region
        $region29: #{tpu_custom_call.1} parent=23 // pred_check
          %p207 = pneg %p119
        $region30: #{tpu_custom_call.1} parent=23 // pred_check_branch
          %209 = sbr.rel (%p207) target = $region32
        $region31: #{tpu_custom_call.1} parent=23 // pred_region
          %p210 = scmp.lt.s32.totalorder %s24, 1
          %s211 = scalar_select %p210, %s24, 1
          %s212 = scalar_lea.vmem %s3, %s211
        $region32: #{tpu_custom_call.1} parent=23 // pred_fallthru
          _
      $region24: #{tpu_custom_call.1} parent=5 // pred_fallthru
        _
      %p213 = scmp.le.s32.totalorder 1, %s17
      %p214 = scmp.lt.s32.totalorder %s17, 3
      %p215 = pnand %p213, %p214
      %p216 = pneg %p215
      // Predicated region
      $region33: #{tpu_custom_call.1} parent=5 // pred_check
        _
      $region34: #{tpu_custom_call.1} parent=5 // pred_check_branch
        %218 = sbr.rel (%p215) target = $region36
      $region35: #{tpu_custom_call.1} parent=5 // pred_region
        %s219 = ssub.s32 %s17, 1
        %s220 = sand.u32 %s44, 1
        %s221 = scalar_lea.sflag [#allocation3], %s220
        %s222 = sand.u32 %s44, 1
        %s223 = smul.addr %s222, 8
        %s224 = scalar_lea.vmem [#allocation2], %s223
        // Predicated region
        $region37: #{tpu_custom_call.1} parent=35 // pred_check
          %p225 = pneg %p57
        $region38: #{tpu_custom_call.1} parent=35 // pred_check_branch
          %227 = sbr.rel (%p225) target = $region40
        $region39: #{tpu_custom_call.1} parent=35 // pred_region
          %228 = dma.done %s221, 128
        $region40: #{tpu_custom_call.1} parent=35 // pred_fallthru
          _
        // Predicated region
        $region41: #{tpu_custom_call.1} parent=35 // pred_check
          %p229 = pneg %p78
        $region42: #{tpu_custom_call.1} parent=35 // pred_check_branch
          %231 = sbr.rel (%p229) target = $region44
        $region43: #{tpu_custom_call.1} parent=35 // pred_region
          %232 = dma.done [#allocation6], 512
        $region44: #{tpu_custom_call.1} parent=35 // pred_fallthru
          _
        %s233 = sand.u32 %s44, 1
        %s234 = scalar_lea.sflag [#allocation3], %s233
        %s235 = sand.u32 %s44, 1
        %s236 = smul.addr %s235, 8
        %s237 = scalar_lea.vmem [#allocation2], %s236
        %p238 = pneg %p57
        %p239 = pneg %p54
        %p240 = pneg %p78
        %p241 = pneg %p75
        %p242 = pneg %p99
        %p243 = pneg %p96
        %p244 = scmp.lt.s32.totalorder %s26, 1
        %s245 = scalar_select %p244, %s26, 1
        %s246 = scalar_lea.vmem %s3, %s245
        %p247 = pneg %p125
        %p248 = pneg %p122
        %p249 = pneg %p153
        %p250 = pneg %p150
        %s251 = sand.u32 %s140, 1
        %s252 = scalar_lea.sflag [#allocation4], %s251
        %s253 = sand.u32 %s140, 1
        %s254 = scalar_lea.vmem [#allocation7], %s253
        %p255 = scmp.lt.s32.totalorder %s26, 1
        %s256 = scalar_select %p255, %s26, 1
        %s257 = scalar_lea.vmem %s3, %s256
        %v258 = vld [vmem:[%s224] sm:$0xff]
        %v259 = vld [vmem:[#allocation5] sm:$0xff]
        %v260 = vld [vmem:[#allocation5 + $0x8] sm:$0xff]
        %v261 = vld [vmem:[#allocation5 + $0x10] sm:$0xff]
        %v262 = vld [vmem:[#allocation5 + $0x18] sm:$0xff]
        %v263 = vld [vmem:[%s2] sm:$0x1]
        %v265 = vlaneseq
        %v266 = vshrl.u32 %v265, 7
        %v267 = vsub.s32 0, %v266
        %v268 = vrot.slane %v263, %v267
        %vm270 = vcmask 261120
        %v272 = vsel %vm270, %v258, 0
        %274 = vmatprep.subr.mxu0 0.0
        %275 = vmatpush1.msra.mxu0 %v259
        %276 = vmatprep.subr.mxu0 0.0
        %277 = vmatpush1.msra.mxu0 %v260
        %278 = vmatprep.subr.mxu0 0.0
        %279 = vmatpush1.msra.mxu0 %v261
        %280 = vmatprep.subr.mxu0 0.0
        %281 = vmatpush1.msra.mxu0 %v262
        %282 = vmatprep.subr.mxu0 0.0
        %283 = vmatpush1.msra.mxu0 0.0
        %284 = vmatprep.subr.mxu0 0.0
        %285 = vmatpush1.msra.mxu0 0.0
        %286 = vmatprep.subr.mxu0 0.0
        %287 = vmatpush1.msra.mxu0 0.0
        %288 = vmatprep.subr.mxu0 0.0
        %289 = vmatpush1.msra.mxu0 0.0
        %290 = vmatprep.subr.mxu0 0.0
        %291 = vmatpush1.msra.mxu0 0.0
        %292 = vmatprep.subr.mxu0 0.0
        %293 = vmatpush1.msra.mxu0 0.0
        %294 = vmatprep.subr.mxu0 0.0
        %295 = vmatpush1.msra.mxu0 0.0
        %296 = vmatprep.subr.mxu0 0.0
        %297 = vmatpush1.msra.mxu0 0.0
        %298 = vmatprep.subr.mxu0 0.0
        %299 = vmatpush1.msra.mxu0 0.0
        %300 = vmatprep.subr.mxu0 0.0
        %301 = vmatpush1.msra.mxu0 0.0
        %302 = vmatprep.subr.mxu0 0.0
        %303 = vmatpush1.msra.mxu0 0.0
        %304 = vmatprep.subr.mxu0 0.0
        %305 = vmatpush1.msra.mxu0 0.0
        %306 = vmatprep.subr.mxu0 0.0
        %307 = vmatpush1.msra.mxu0 0.0
        %308 = vmatprep.subr.mxu0 0.0
        %309 = vmatpush1.msra.mxu0 0.0
        %310 = vmatprep.subr.mxu0 0.0
        %311 = vmatpush1.msra.mxu0 0.0
        %312 = vmatprep.subr.mxu0 0.0
        %313 = vmatpush1.msra.mxu0 0.0
        %314 = vmatprep.subr.mxu0 0.0
        %315 = vmatpush1.msra.mxu0 0.0
        %316 = vmatprep.subr.mxu0 0.0
        %317 = vmatpush1.msra.mxu0 0.0
        %318 = vmatprep.subr.mxu0 0.0
        %319 = vmatpush1.msra.mxu0 0.0
        %320 = vmatprep.subr.mxu0 0.0
        %321 = vmatpush1.msra.mxu0 0.0
        %322 = vmatprep.subr.mxu0 0.0
        %323 = vmatpush1.msra.mxu0 0.0
        %324 = vmatprep.subr.mxu0 0.0
        %325 = vmatpush1.msra.mxu0 0.0
        %326 = vmatprep.subr.mxu0 0.0
        %327 = vmatpush1.msra.mxu0 0.0
        %328 = vmatprep.subr.mxu0 0.0
        %329 = vmatpush1.msra.mxu0 0.0
        %330 = vmatprep.subr.mxu0 0.0
        %331 = vmatpush1.msra.mxu0 0.0
        %332 = vmatprep.subr.mxu0 0.0
        %333 = vmatpush1.msra.mxu0 0.0
        %334 = vmatprep.subr.mxu0 0.0
        %335 = vmatpush1.msra.mxu0 0.0
        %336 = vmatprep.subr.mxu0 0.0
        %337 = vmatpush1.msra.mxu0 0.0
        %338 = vmatprep.mubr.f32.mxu0 0.0
        %339 = vmatmul.mubr.f32.gmra.mrb[0].mxu0 %v272
        %v340 = vpop.f32.mrb[0].mxu0
        %v341 = vadd.f32 %v268, %v340
        %v342 = vpop.f32.mrb[0].mxu0
        %343 = vdwg.mxu0
        %v344 = vxor.u32 %v341, 2147483648
        %v345 = vmul.f32 %v344, 1.442695
        %v346 = vpow.pop %v345
        %v347 = vadd.f32 %v346, 1.0
        %v348 = vrcp.pop %v347
        %v349 = vmul.f32 1.0, %v348
        %v350 = vld [vmem:[%s257] sm:$0x1]
        %v352 = vlaneseq
        %v353 = vshrl.u32 %v352, 7
        %v354 = vsub.s32 0, %v353
        %v355 = vrot.slane %v350, %v354
        %v357 = vmul.f32 %v349, %v355
        %v358 = vsel %vm270, %v357, 0.0
        %359 = vadd.xlane.f32.xlu0 %v358
        %v360 = vpop.xlane.xlu0 %359
        %v362 = vlaneseq
        %v363 = vand.u32 %v362, 127
        %v364 = vlaneseq
        %v365 = vshrl.u32 %v364, 7
        %v366 = vsub.s32 %v363, %v365
        %v367 = vrot.slane %v360, %v366
        %vm369 = vcmask 57344
        %370 = vst.msk [vmem:[%s254] sm:$0x1] %vm369, %v367
        %s371 = sand.u32 %s140, 1
        %s372 = scalar_lea.sflag [#allocation4], %s371
        %s373 = sand.u32 %s140, 1
        %s374 = scalar_lea.vmem [#allocation7], %s373
        // Predicated region
        $region45: #{tpu_custom_call.1} parent=35 // pred_check
          %p375 = pneg %p150
        $region46: #{tpu_custom_call.1} parent=35 // pred_check_branch
          %377 = sbr.rel (%p375) target = $region48
        $region47: #{tpu_custom_call.1} parent=35 // pred_region
          %s379 = ssub.s32 16, 16
          %380 = vsyncadd %s372, %s379
          %s381 = sadd.s32 %s27, %s26
          %s382 = smul.addr %s381, 16
          %s383 = scalar_lea.hbm %s4, %s382
          %s385 = sshll.u32 %s374, 4
          %s386 = int_to_ptr.vmem [resolvable:$true] %s385
          %388 = dma.vmem_to_hbm [thread:$0]  %s386, 16, %s383, %s372
        $region48: #{tpu_custom_call.1} parent=35 // pred_fallthru
          _
      $region36: #{tpu_custom_call.1} parent=5 // pred_fallthru
        _
      %p389 = scmp.le.s32.totalorder 2, %s17
      // Predicated region
      $region49: #{tpu_custom_call.1} parent=5 // pred_check
        %p390 = pneg %p389
      $region50: #{tpu_custom_call.1} parent=5 // pred_check_branch
        %392 = sbr.rel (%p390) target = $region52
      $region51: #{tpu_custom_call.1} parent=5 // pred_region
        %s393 = ssub.s32 %s17, 2
        // Predicated region
        $region53: #{tpu_custom_call.1} parent=51 // pred_check
          %p394 = pneg %p156
        $region54: #{tpu_custom_call.1} parent=51 // pred_check_branch
          %396 = sbr.rel (%p394) target = $region56
        $region55: #{tpu_custom_call.1} parent=51 // pred_region
          %s397 = sand.u32 %s141, 1
          %s398 = scalar_lea.sflag [#allocation4], %s397
          %s399 = sand.u32 %s141, 1
          %s400 = scalar_lea.vmem [#allocation7], %s399
          %401 = dma.done %s398, 16
        $region56: #{tpu_custom_call.1} parent=51 // pred_fallthru
          _
      $region52: #{tpu_custom_call.1} parent=5 // pred_fallthru
        _
    $region6: #{tpu_custom_call.1} parent=1 // loop_footer
      %s21 = sadd.s32 1, %s17
    $region7: #{tpu_custom_call.1} parent=1 // loop_footer_branch
      %16 = sbr.rel target = $region3
    $region8: #{tpu_custom_call.1} parent=1 // loop_exit
      _
    %402 = vsyncpa [#allocation3], 1
    %s403 = scalar_lea.sflag [#allocation3], 1
    %404 = vsyncpa %s403, 1
    %405 = vsyncpa [#allocation6], 1
    %406 = vsyncpa [#allocation4], 1
    %s407 = scalar_lea.sflag [#allocation4], 1
    %408 = vsyncpa %s407, 1

</llo_original>
